<compile_context>
chip_gen: v7x
topology: tpu7x:2x2x1
jax: 0.10.0
libtpu: 0.0.40
codegen_flags: <defaults>
</compile_context>

<pallas_src>
import functools

import jax
import jax.numpy as jnp
import numpy as np
from jax.experimental import pallas as pl
from jax.experimental.pallas import tpu as pltpu

EPS = 1e-5  # torch.nn.InstanceNorm2d default eps


def _ins_resblock_kernel(x_ref, w_ref, out_ref, win_ref, *, H, W):
    C = x_ref.shape[1]
    HW = H * W
    inv_hw = jnp.float32(1.0 / HW)
    cdt = win_ref.dtype  # MXU operand dtype (f32 here; bf16 for production C)

    # (1, HW) column-index masks for the width reflection (broadcast over C).
    col = jax.lax.broadcasted_iota(jnp.int32, (1, HW), 1) % W
    left_m = col == 0
    right_m = col == (W - 1)

    # Hoisted weight load: (2, 3, Cout, 3*Cin), already in compute dtype.
    w_all = w_ref[...]

    def conv3x3(src, w):
        """ReflectionPad(1) + 3x3 conv. src: (C, HW) f32, w: (3, Cout, 3*Cin).

        Window scratch layout (3*Cin rows, HW + 2*W lanes):
          rows [0:C)    = left  column variant (dw = -1, column-reflected)
          rows [C:2C)   = center column variant (dw =  0)
          rows [2C:3C)  = right column variant (dw = +1)
        each row-halo'd along the lane axis as
          [reflected row 1 | rows 0..H-1 | reflected row H-2].
        Tap (dh, dw) is then a contiguous (3C, HW) slice at lane offset
        (dh+1)*W, so the whole conv is 3 dots with K = 3*Cin.
        """
        src_c = src.astype(cdt)

        def row_halo(rows, v):
            win_ref[rows, 0:W] = v[:, W:2 * W]                       # row 1
            win_ref[rows, W:W + HW] = v
            win_ref[rows, W + HW:2 * W + HW] = v[:, (H - 2) * W:(H - 1) * W]

        # Center variant first; the +-1 flat lane shifts are then read back
        # from its halo (no rolls / extra padded temporary needed).
        row_halo(slice(C, 2 * C), src_c)
        c_m1 = win_ref[C:2 * C, W - 1:W - 1 + HW]   # value at flat p-1
        c_p1 = win_ref[C:2 * C, W + 1:W + 1 + HW]   # value at flat p+1
        # Column-reflected left/right variants: 2 selects per conv total.
        row_halo(slice(0, C), jnp.where(left_m, c_p1, c_m1))           # dw = -1
        row_halo(slice(2 * C, 3 * C), jnp.where(right_m, c_m1, c_p1))  # dw = +1

        # One (Cout, 3*Cin) x (3*Cin, HW) MXU contraction per row offset dh.
        acc = None
        for kh in range(3):                           # dh = kh - 1
            win = win_ref[:, kh * W:kh * W + HW]      # (3C, HW), contiguous
            part = jnp.dot(w[kh], win, preferred_element_type=jnp.float32)
            acc = part if acc is None else acc + part
        return acc

    def instance_norm(h):
        # Single-pass stats (sum + sum of squares) in f32; biased var (torch).
        s = jnp.sum(h, axis=1, keepdims=True)
        ss = jnp.sum(h * h, axis=1, keepdims=True)
        m = s * inv_hw
        v = ss * inv_hw - m * m
        return (h - m) * jax.lax.rsqrt(v + EPS)

    x2 = x_ref[0].astype(jnp.float32)                         # (C, HW)
    h1 = jnp.maximum(instance_norm(conv3x3(x2, w_all[0])), 0.0)  # conv1->IN->ReLU
    h2 = instance_norm(conv3x3(h1, w_all[1]))                    # conv2->IN
    out_ref[0] = (h2 + x2).astype(out_ref.dtype)                 # +residual


def ins_res_block(x, w1, b1, w2, b2, *, compute_dtype=None):
    """x: (N,C,H,W); w*: (C,C,3,3) OIHW; b*: (C,). stride=1, dropout=0.

    b1/b2 are accepted for interface parity with nn.Conv2d but unused: each
    conv feeds directly into InstanceNorm, which subtracts the per-channel
    mean, so a per-channel bias cancels exactly (forward semantics unchanged).

    compute_dtype: dtype of the MXU operands (weights + window scratch).
    Defaults to x.dtype; pass jnp.bfloat16 for production channel counts.
    """
    del b1, b2
    N, C, H, W = x.shape
    assert H >= 2 and W >= 2, "ReflectionPad2d(1) requires H >= 2 and W >= 2"
    HW = H * W
    cdt = jnp.dtype(compute_dtype) if compute_dtype is not None else jnp.dtype(x.dtype)

    x_flat = x.reshape(N, C, HW)             # free reshape -> lane-dense layout

    # Per-kh weight slabs for the folded contraction:
    #   (O, I, kh, kw) -> (kh, O, kw*I)      K index = kw*Cin + cin
    def prep(w):
        return jnp.transpose(w, (2, 0, 3, 1)).reshape(3, C, 3 * C)
    w_all = jnp.stack([prep(w1), prep(w2)]).astype(cdt)        # (2, 3, C, 3*C)

    itm = jnp.dtype(x.dtype).itemsize
    w_bytes = 2 * 3 * C * 3 * C * cdt.itemsize
    cost = pl.CostEstimate(
        flops=2 * 2 * 9 * C * C * HW * N,       # 2 convs, 2*M*K*N per element
        transcendentals=4 * N * C,              # rsqrt per (sample, channel, IN)
        bytes_accessed=2 * N * C * HW * itm + w_bytes,
    )

    # Rough per-step VMEM working set; raise the scoped limit only when the
    # default (16 MiB v5e / 32 MiB v6e,v7x) would bind.  Shapes that still do
    # not fit (v7x 64 MiB physical) should use a row-tile grid axis instead.
    est_vmem = (4 * C * HW * itm                              # in/out, 2 bufs
                + 2 * w_bytes                                 # weight buffers
                + 3 * C * (HW + 2 * W) * cdt.itemsize         # window scratch
                + 6 * C * HW * 4)                             # f32 temporaries
    cp_kwargs = dict(dimension_semantics=("parallel",))
    if est_vmem > 24 * 1024 * 1024:
        cp_kwargs["vmem_limit_bytes"] = int(min(est_vmem * 3 // 2,
                                                100 * 1024 * 1024))

    out_flat = pl.pallas_call(
        functools.partial(_ins_resblock_kernel, H=H, W=W),
        out_shape=jax.ShapeDtypeStruct((N, C, HW), x.dtype),
        grid_spec=pltpu.PrefetchScalarGridSpec(
            num_scalar_prefetch=0,
            grid=(N,),
            in_specs=[
                pl.BlockSpec((1, C, HW), lambda n: (n, 0, 0)),
                pl.BlockSpec((2, 3, C, 3 * C), lambda n: (0, 0, 0, 0)),
            ],
            out_specs=pl.BlockSpec((1, C, HW), lambda n: (n, 0, 0)),
            # Window scratch shared by both convs (left/center/right variants
            # with row halos), in the MXU operand dtype.
            scratch_shapes=[pltpu.VMEM((3 * C, HW + 2 * W), cdt)],
        ),
        compiler_params=pltpu.CompilerParams(**cp_kwargs),
        cost_estimate=cost,
    )(x_flat, w_all)
    return out_flat.reshape(N, C, H, W)


def _reference(x, w1, b1, w2, b2):
    """Pure-JAX reference matching the PyTorch module (biases included)."""
    def conv3x3(h, w, b):
        hp = jnp.pad(h, ((0, 0), (0, 0), (1, 1), (1, 1)), mode="reflect")
        y = jax.lax.conv_general_dilated(
            hp, w, (1, 1), "VALID",
            dimension_numbers=("NCHW", "OIHW", "NCHW"))
        return y + b[None, :, None, None]

    def inorm(h):
        m = h.mean(axis=(2, 3), keepdims=True)
        v = ((h - m) ** 2).mean(axis=(2, 3), keepdims=True)
        return (h - m) / jnp.sqrt(v + EPS)

    h = jnp.maximum(inorm(conv3x3(x, w1, b1)), 0.0)
    h = inorm(conv3x3(h, w2, b2))
    return h + x


if __name__ == "__main__":
    N, C, H, W = 2, 4, 16, 16   # inplanes == planes, stride=1, dropout=0.0

    key = jax.random.PRNGKey(0)
    kx, kw1, kb1, kw2, kb2 = jax.random.split(key, 5)

    x = jax.random.normal(kx, (N, C, H, W), jnp.float32)
    # gaussian_weights_init: conv weights ~ N(0, 0.02)
    w1 = 0.02 * jax.random.normal(kw1, (C, C, 3, 3), jnp.float32)
    w2 = 0.02 * jax.random.normal(kw2, (C, C, 3, 3), jnp.float32)
    # conv biases (cancelled by InstanceNorm; kept for interface parity)
    b1 = 0.1 * jax.random.normal(kb1, (C,), jnp.float32)
    b2 = 0.1 * jax.random.normal(kb2, (C,), jnp.float32)

    out = jax.block_until_ready(ins_res_block(x, w1, b1, w2, b2))
    ref = jax.block_until_ready(_reference(x, w1, b1, w2, b2))

    np.testing.assert_allclose(np.asarray(out), np.asarray(ref),
                               rtol=1e-4, atol=1e-4)
    print("KERNEL_OK")
</pallas_src>

<mosaic_0001>
module attributes {stable_mosaic.version = 11 : i64} {
  func.func @_ins_resblock_kernel(%arg0: i32, %arg1: memref<1x4x256xf32, #tpu.memory_space<vmem>>, %arg2: memref<2x3x4x12xf32, #tpu.memory_space<vmem>>, %arg3: memref<1x4x256xf32, #tpu.memory_space<vmem>>, %arg4: memref<12x288xf32, #tpu.memory_space<vmem>>) attributes {dimension_semantics = [#tpu.dimension_semantics<parallel>], iteration_bounds = array<i64: 2>, scalar_prefetch = 0 : i64, scratch_operands = 1 : i64, tpu.core_type = #tpu.core_type<tc>, window_params = [{transform_indices = @transform_0, window_bounds = array<i64: 1, 4, 256>}, {pipeline_mode = #tpu.pipeline_mode<synchronous>, transform_indices = @transform_1, window_bounds = array<i64: 2, 3, 4, 12>}, {transform_indices = @transform_2, window_bounds = array<i64: 1, 4, 256>}]} {
    %0 = tpu.iota {dimensions = array<i32: 1>} : vector<1x256xi32>
    %c16_i32 = arith.constant 16 : i32
    %c0_i32 = arith.constant 0 : i32
    %1 = arith.cmpi eq, %c16_i32, %c0_i32 : i32
    %c1_i32 = arith.constant 1 : i32
    %2 = arith.select %1, %c1_i32, %c16_i32 : i32
    %3 = vector.broadcast %2 : i32 to vector<1x256xi32>
    %4 = arith.remsi %0, %3 : vector<1x256xi32>
    %c0_i32_0 = arith.constant 0 : i32
    %5 = vector.broadcast %c0_i32_0 : i32 to vector<1x256xi32>
    %6 = arith.cmpi ne, %4, %5 : vector<1x256xi32>
    %c0_i32_1 = arith.constant 0 : i32
    %7 = vector.broadcast %c0_i32_1 : i32 to vector<1x256xi32>
    %8 = arith.cmpi slt, %4, %7 : vector<1x256xi32>
    %c0_i32_2 = arith.constant 0 : i32
    %9 = arith.cmpi slt, %2, %c0_i32_2 : i32
    %10 = vector.broadcast %9 : i1 to vector<1x256xi1>
    %11 = vector.broadcast %10 : vector<1x256xi1> to vector<1x256xi1>
    %12 = arith.xori %8, %11 : vector<1x256xi1>
    %13 = arith.andi %12, %6 : vector<1x256xi1>
    %14 = vector.broadcast %2 : i32 to vector<1x256xi32>
    %15 = arith.addi %4, %14 : vector<1x256xi32>
    %16 = arith.select %13, %15, %4 : vector<1x256xi1>, vector<1x256xi32>
    %c0_i32_3 = arith.constant 0 : i32
    %17 = vector.broadcast %c0_i32_3 : i32 to vector<1x256xi32>
    %18 = arith.cmpi eq, %16, %17 : vector<1x256xi32>
    %c15_i32 = arith.constant 15 : i32
    %19 = vector.broadcast %c15_i32 : i32 to vector<1x256xi32>
    %20 = arith.cmpi eq, %16, %19 : vector<1x256xi32>
    %c0 = arith.constant 0 : index
    %c0_4 = arith.constant 0 : index
    %c0_5 = arith.constant 0 : index
    %c0_6 = arith.constant 0 : index
    %21 = vector.load %arg2[%c0, %c0_4, %c0_5, %c0_6] : memref<2x3x4x12xf32, #tpu.memory_space<vmem>>, vector<2x3x4x12xf32>
    %c0_7 = arith.constant 0 : index
    %c0_8 = arith.constant 0 : index
    %c0_9 = arith.constant 0 : index
    %22 = vector.load %arg1[%c0_7, %c0_8, %c0_9] : memref<1x4x256xf32, #tpu.memory_space<vmem>>, vector<1x4x256xf32>
    %23 = vector.shape_cast %22 : vector<1x4x256xf32> to vector<4x256xf32>
    %24 = vector.extract_strided_slice %21 {offsets = [0, 0, 0, 0], sizes = [1, 3, 4, 12], strides = [1, 1, 1, 1]} : vector<2x3x4x12xf32> to vector<1x3x4x12xf32>
    %25 = vector.shape_cast %24 : vector<1x3x4x12xf32> to vector<3x4x12xf32>
    %26 = vector.extract_strided_slice %23 {offsets = [0, 16], sizes = [4, 16], strides = [1, 1]} : vector<4x256xf32> to vector<4x16xf32>
    %c4 = arith.constant 4 : index
    %c0_10 = arith.constant 0 : index
    %27 = vector.load %arg4[%c4, %c0_10] : memref<12x288xf32, #tpu.memory_space<vmem>>, vector<4x16xf32>
    tpu.vector_store %arg4[%c4, %c0_10], %26 {strides = array<i32>} : memref<12x288xf32, #tpu.memory_space<vmem>>, vector<4x16xf32>,
    %c4_11 = arith.constant 4 : index
    %c16 = arith.constant 16 : index
    %28 = vector.load %arg4[%c4_11, %c16] : memref<12x288xf32, #tpu.memory_space<vmem>>, vector<4x256xf32>
    tpu.vector_store %arg4[%c4_11, %c16], %23 {strides = array<i32>} : memref<12x288xf32, #tpu.memory_space<vmem>>, vector<4x256xf32>,
    %29 = vector.extract_strided_slice %23 {offsets = [0, 224], sizes = [4, 16], strides = [1, 1]} : vector<4x256xf32> to vector<4x16xf32>
    %c4_12 = arith.constant 4 : index
    %c272 = arith.constant 272 : index
    %30 = vector.load %arg4[%c4_12, %c272] : memref<12x288xf32, #tpu.memory_space<vmem>>, vector<4x16xf32>
    tpu.vector_store %arg4[%c4_12, %c272], %29 {strides = array<i32>} : memref<12x288xf32, #tpu.memory_space<vmem>>, vector<4x16xf32>,
    %c4_13 = arith.constant 4 : index
    %c15 = arith.constant 15 : index
    %31 = vector.load %arg4[%c4_13, %c15] : memref<12x288xf32, #tpu.memory_space<vmem>>, vector<4x256xf32>
    %c4_14 = arith.constant 4 : index
    %c17 = arith.constant 17 : index
    %32 = vector.load %arg4[%c4_14, %c17] : memref<12x288xf32, #tpu.memory_space<vmem>>, vector<4x256xf32>
    %33 = vector.shape_cast %18 : vector<1x256xi1> to vector<1x256xi1>
    %34 = vector.broadcast %33 : vector<1x256xi1> to vector<4x256xi1>
    %35 = arith.select %34, %32, %31 : vector<4x256xi1>, vector<4x256xf32>
    %36 = vector.extract_strided_slice %35 {offsets = [0, 16], sizes = [4, 16], strides = [1, 1]} : vector<4x256xf32> to vector<4x16xf32>
    %c0_15 = arith.constant 0 : index
    %c0_16 = arith.constant 0 : index
    %37 = vector.load %arg4[%c0_15, %c0_16] : memref<12x288xf32, #tpu.memory_space<vmem>>, vector<4x16xf32>
    tpu.vector_store %arg4[%c0_15, %c0_16], %36 {strides = array<i32>} : memref<12x288xf32, #tpu.memory_space<vmem>>, vector<4x16xf32>,
    %c0_17 = arith.constant 0 : index
    %c16_18 = arith.constant 16 : index
    %38 = vector.load %arg4[%c0_17, %c16_18] : memref<12x288xf32, #tpu.memory_space<vmem>>, vector<4x256xf32>
    tpu.vector_store %arg4[%c0_17, %c16_18], %35 {strides = array<i32>} : memref<12x288xf32, #tpu.memory_space<vmem>>, vector<4x256xf32>,
    %39 = vector.extract_strided_slice %35 {offsets = [0, 224], sizes = [4, 16], strides = [1, 1]} : vector<4x256xf32> to vector<4x16xf32>
    %c0_19 = arith.constant 0 : index
    %c272_20 = arith.constant 272 : index
    %40 = vector.load %arg4[%c0_19, %c272_20] : memref<12x288xf32, #tpu.memory_space<vmem>>, vector<4x16xf32>
    tpu.vector_store %arg4[%c0_19, %c272_20], %39 {strides = array<i32>} : memref<12x288xf32, #tpu.memory_space<vmem>>, vector<4x16xf32>,
    %41 = vector.shape_cast %20 : vector<1x256xi1> to vector<1x256xi1>
    %42 = vector.broadcast %41 : vector<1x256xi1> to vector<4x256xi1>
    %43 = arith.select %42, %31, %32 : vector<4x256xi1>, vector<4x256xf32>
    %44 = vector.extract_strided_slice %43 {offsets = [0, 16], sizes = [4, 16], strides = [1, 1]} : vector<4x256xf32> to vector<4x16xf32>
    %c8 = arith.constant 8 : index
    %c0_21 = arith.constant 0 : index
    %45 = vector.load %arg4[%c8, %c0_21] : memref<12x288xf32, #tpu.memory_space<vmem>>, vector<4x16xf32>
    tpu.vector_store %arg4[%c8, %c0_21], %44 {strides = array<i32>} : memref<12x288xf32, #tpu.memory_space<vmem>>, vector<4x16xf32>,
    %c8_22 = arith.constant 8 : index
    %c16_23 = arith.constant 16 : index
    %46 = vector.load %arg4[%c8_22, %c16_23] : memref<12x288xf32, #tpu.memory_space<vmem>>, vector<4x256xf32>
    tpu.vector_store %arg4[%c8_22, %c16_23], %43 {strides = array<i32>} : memref<12x288xf32, #tpu.memory_space<vmem>>, vector<4x256xf32>,
    %47 = vector.extract_strided_slice %43 {offsets = [0, 224], sizes = [4, 16], strides = [1, 1]} : vector<4x256xf32> to vector<4x16xf32>
    %c8_24 = arith.constant 8 : index
    %c272_25 = arith.constant 272 : index
    %48 = vector.load %arg4[%c8_24, %c272_25] : memref<12x288xf32, #tpu.memory_space<vmem>>, vector<4x16xf32>
    tpu.vector_store %arg4[%c8_24, %c272_25], %47 {strides = array<i32>} : memref<12x288xf32, #tpu.memory_space<vmem>>, vector<4x16xf32>,
    %c0_26 = arith.constant 0 : index
    %c0_27 = arith.constant 0 : index
    %49 = vector.load %arg4[%c0_26, %c0_27] : memref<12x288xf32, #tpu.memory_space<vmem>>, vector<12x256xf32>
    %50 = vector.extract_strided_slice %25 {offsets = [0, 0, 0], sizes = [1, 4, 12], strides = [1, 1, 1]} : vector<3x4x12xf32> to vector<1x4x12xf32>
    %51 = vector.shape_cast %50 : vector<1x4x12xf32> to vector<4x12xf32>
    %cst = arith.constant dense<0.000000e+00> : vector<4x256xf32>
    %52 = tpu.matmul %51, %49, %cst {dimension_numbers = #tpu.dot_dimension_numbers<[1], [0], [0], [1], [0, 0, 1, 1], [], []>} : vector<4x12xf32>, vector<12x256xf32>, vector<4x256xf32> -> vector<4x256xf32>
    %c0_28 = arith.constant 0 : index
    %c16_29 = arith.constant 16 : index
    %53 = vector.load %arg4[%c0_28, %c16_29] : memref<12x288xf32, #tpu.memory_space<vmem>>, vector<12x256xf32>
    %54 = vector.extract_strided_slice %25 {offsets = [1, 0, 0], sizes = [1, 4, 12], strides = [1, 1, 1]} : vector<3x4x12xf32> to vector<1x4x12xf32>
    %55 = vector.shape_cast %54 : vector<1x4x12xf32> to vector<4x12xf32>
    %cst_30 = arith.constant dense<0.000000e+00> : vector<4x256xf32>
    %56 = tpu.matmul %55, %53, %cst_30 {dimension_numbers = #tpu.dot_dimension_numbers<[1], [0], [0], [1], [0, 0, 1, 1], [], []>} : vector<4x12xf32>, vector<12x256xf32>, vector<4x256xf32> -> vector<4x256xf32>
    %57 = arith.addf %52, %56 : vector<4x256xf32>
    %c0_31 = arith.constant 0 : index
    %c32 = arith.constant 32 : index
    %58 = vector.load %arg4[%c0_31, %c32] : memref<12x288xf32, #tpu.memory_space<vmem>>, vector<12x256xf32>
    %59 = vector.extract_strided_slice %25 {offsets = [2, 0, 0], sizes = [1, 4, 12], strides = [1, 1, 1]} : vector<3x4x12xf32> to vector<1x4x12xf32>
    %60 = vector.shape_cast %59 : vector<1x4x12xf32> to vector<4x12xf32>
    %cst_32 = arith.constant dense<0.000000e+00> : vector<4x256xf32>
    %61 = tpu.matmul %60, %58, %cst_32 {dimension_numbers = #tpu.dot_dimension_numbers<[1], [0], [0], [1], [0, 0, 1, 1], [], []>} : vector<4x12xf32>, vector<12x256xf32>, vector<4x256xf32> -> vector<4x256xf32>
    %62 = arith.addf %57, %61 : vector<4x256xf32>
    %cst_33 = arith.constant dense<0.000000e+00> : vector<4xf32>
    %63 = vector.multi_reduction <add>, %62, %cst_33 [1] : vector<4x256xf32> to vector<4xf32>
    %64 = vector.shape_cast %63 : vector<4xf32> to vector<4x1xf32>
    %65 = arith.mulf %62, %62 : vector<4x256xf32>
    %cst_34 = arith.constant dense<0.000000e+00> : vector<4xf32>
    %66 = vector.multi_reduction <add>, %65, %cst_34 [1] : vector<4x256xf32> to vector<4xf32>
    %67 = vector.shape_cast %66 : vector<4xf32> to vector<4x1xf32>
    %cst_35 = arith.constant 3.906250e-03 : f32
    %68 = vector.broadcast %cst_35 : f32 to vector<4x1xf32>
    %69 = arith.mulf %64, %68 : vector<4x1xf32>
    %cst_36 = arith.constant 3.906250e-03 : f32
    %70 = vector.broadcast %cst_36 : f32 to vector<4x1xf32>
    %71 = arith.mulf %67, %70 : vector<4x1xf32>
    %72 = arith.mulf %69, %69 : vector<4x1xf32>
    %73 = arith.subf %71, %72 : vector<4x1xf32>
    %74 = vector.broadcast %69 : vector<4x1xf32> to vector<4x256xf32>
    %75 = arith.subf %62, %74 : vector<4x256xf32>
    %cst_37 = arith.constant 9.99999974E-6 : f32
    %76 = vector.broadcast %cst_37 : f32 to vector<4x1xf32>
    %77 = arith.addf %73, %76 : vector<4x1xf32>
    %78 = math.rsqrt %77 : vector<4x1xf32>
    %79 = vector.broadcast %78 : vector<4x1xf32> to vector<4x256xf32>
    %80 = arith.mulf %75, %79 : vector<4x256xf32>
    %cst_38 = arith.constant 0.000000e+00 : f32
    %81 = vector.broadcast %cst_38 : f32 to vector<4x256xf32>
    %82 = arith.maximumf %80, %81 : vector<4x256xf32>
    %83 = vector.extract_strided_slice %21 {offsets = [1, 0, 0, 0], sizes = [1, 3, 4, 12], strides = [1, 1, 1, 1]} : vector<2x3x4x12xf32> to vector<1x3x4x12xf32>
    %84 = vector.shape_cast %83 : vector<1x3x4x12xf32> to vector<3x4x12xf32>
    %85 = vector.extract_strided_slice %82 {offsets = [0, 16], sizes = [4, 16], strides = [1, 1]} : vector<4x256xf32> to vector<4x16xf32>
    %c4_39 = arith.constant 4 : index
    %c0_40 = arith.constant 0 : index
    %86 = vector.load %arg4[%c4_39, %c0_40] : memref<12x288xf32, #tpu.memory_space<vmem>>, vector<4x16xf32>
    tpu.vector_store %arg4[%c4_39, %c0_40], %85 {strides = array<i32>} : memref<12x288xf32, #tpu.memory_space<vmem>>, vector<4x16xf32>,
    %c4_41 = arith.constant 4 : index
    %c16_42 = arith.constant 16 : index
    %87 = vector.load %arg4[%c4_41, %c16_42] : memref<12x288xf32, #tpu.memory_space<vmem>>, vector<4x256xf32>
    tpu.vector_store %arg4[%c4_41, %c16_42], %82 {strides = array<i32>} : memref<12x288xf32, #tpu.memory_space<vmem>>, vector<4x256xf32>,
    %88 = vector.extract_strided_slice %82 {offsets = [0, 224], sizes = [4, 16], strides = [1, 1]} : vector<4x256xf32> to vector<4x16xf32>
    %c4_43 = arith.constant 4 : index
    %c272_44 = arith.constant 272 : index
    %89 = vector.load %arg4[%c4_43, %c272_44] : memref<12x288xf32, #tpu.memory_space<vmem>>, vector<4x16xf32>
    tpu.vector_store %arg4[%c4_43, %c272_44], %88 {strides = array<i32>} : memref<12x288xf32, #tpu.memory_space<vmem>>, vector<4x16xf32>,
    %c4_45 = arith.constant 4 : index
    %c15_46 = arith.constant 15 : index
    %90 = vector.load %arg4[%c4_45, %c15_46] : memref<12x288xf32, #tpu.memory_space<vmem>>, vector<4x256xf32>
    %c4_47 = arith.constant 4 : index
    %c17_48 = arith.constant 17 : index
    %91 = vector.load %arg4[%c4_47, %c17_48] : memref<12x288xf32, #tpu.memory_space<vmem>>, vector<4x256xf32>
    %92 = vector.shape_cast %18 : vector<1x256xi1> to vector<1x256xi1>
    %93 = vector.broadcast %92 : vector<1x256xi1> to vector<4x256xi1>
    %94 = arith.select %93, %91, %90 : vector<4x256xi1>, vector<4x256xf32>
    %95 = vector.extract_strided_slice %94 {offsets = [0, 16], sizes = [4, 16], strides = [1, 1]} : vector<4x256xf32> to vector<4x16xf32>
    %c0_49 = arith.constant 0 : index
    %c0_50 = arith.constant 0 : index
    %96 = vector.load %arg4[%c0_49, %c0_50] : memref<12x288xf32, #tpu.memory_space<vmem>>, vector<4x16xf32>
    tpu.vector_store %arg4[%c0_49, %c0_50], %95 {strides = array<i32>} : memref<12x288xf32, #tpu.memory_space<vmem>>, vector<4x16xf32>,
    %c0_51 = arith.constant 0 : index
    %c16_52 = arith.constant 16 : index
    %97 = vector.load %arg4[%c0_51, %c16_52] : memref<12x288xf32, #tpu.memory_space<vmem>>, vector<4x256xf32>
    tpu.vector_store %arg4[%c0_51, %c16_52], %94 {strides = array<i32>} : memref<12x288xf32, #tpu.memory_space<vmem>>, vector<4x256xf32>,
    %98 = vector.extract_strided_slice %94 {offsets = [0, 224], sizes = [4, 16], strides = [1, 1]} : vector<4x256xf32> to vector<4x16xf32>
    %c0_53 = arith.constant 0 : index
    %c272_54 = arith.constant 272 : index
    %99 = vector.load %arg4[%c0_53, %c272_54] : memref<12x288xf32, #tpu.memory_space<vmem>>, vector<4x16xf32>
    tpu.vector_store %arg4[%c0_53, %c272_54], %98 {strides = array<i32>} : memref<12x288xf32, #tpu.memory_space<vmem>>, vector<4x16xf32>,
    %100 = vector.shape_cast %20 : vector<1x256xi1> to vector<1x256xi1>
    %101 = vector.broadcast %100 : vector<1x256xi1> to vector<4x256xi1>
    %102 = arith.select %101, %90, %91 : vector<4x256xi1>, vector<4x256xf32>
    %103 = vector.extract_strided_slice %102 {offsets = [0, 16], sizes = [4, 16], strides = [1, 1]} : vector<4x256xf32> to vector<4x16xf32>
    %c8_55 = arith.constant 8 : index
    %c0_56 = arith.constant 0 : index
    %104 = vector.load %arg4[%c8_55, %c0_56] : memref<12x288xf32, #tpu.memory_space<vmem>>, vector<4x16xf32>
    tpu.vector_store %arg4[%c8_55, %c0_56], %103 {strides = array<i32>} : memref<12x288xf32, #tpu.memory_space<vmem>>, vector<4x16xf32>,
    %c8_57 = arith.constant 8 : index
    %c16_58 = arith.constant 16 : index
    %105 = vector.load %arg4[%c8_57, %c16_58] : memref<12x288xf32, #tpu.memory_space<vmem>>, vector<4x256xf32>
    tpu.vector_store %arg4[%c8_57, %c16_58], %102 {strides = array<i32>} : memref<12x288xf32, #tpu.memory_space<vmem>>, vector<4x256xf32>,
    %106 = vector.extract_strided_slice %102 {offsets = [0, 224], sizes = [4, 16], strides = [1, 1]} : vector<4x256xf32> to vector<4x16xf32>
    %c8_59 = arith.constant 8 : index
    %c272_60 = arith.constant 272 : index
    %107 = vector.load %arg4[%c8_59, %c272_60] : memref<12x288xf32, #tpu.memory_space<vmem>>, vector<4x16xf32>
    tpu.vector_store %arg4[%c8_59, %c272_60], %106 {strides = array<i32>} : memref<12x288xf32, #tpu.memory_space<vmem>>, vector<4x16xf32>,
    %c0_61 = arith.constant 0 : index
    %c0_62 = arith.constant 0 : index
    %108 = vector.load %arg4[%c0_61, %c0_62] : memref<12x288xf32, #tpu.memory_space<vmem>>, vector<12x256xf32>
    %109 = vector.extract_strided_slice %84 {offsets = [0, 0, 0], sizes = [1, 4, 12], strides = [1, 1, 1]} : vector<3x4x12xf32> to vector<1x4x12xf32>
    %110 = vector.shape_cast %109 : vector<1x4x12xf32> to vector<4x12xf32>
    %cst_63 = arith.constant dense<0.000000e+00> : vector<4x256xf32>
    %111 = tpu.matmul %110, %108, %cst_63 {dimension_numbers = #tpu.dot_dimension_numbers<[1], [0], [0], [1], [0, 0, 1, 1], [], []>} : vector<4x12xf32>, vector<12x256xf32>, vector<4x256xf32> -> vector<4x256xf32>
    %c0_64 = arith.constant 0 : index
    %c16_65 = arith.constant 16 : index
    %112 = vector.load %arg4[%c0_64, %c16_65] : memref<12x288xf32, #tpu.memory_space<vmem>>, vector<12x256xf32>
    %113 = vector.extract_strided_slice %84 {offsets = [1, 0, 0], sizes = [1, 4, 12], strides = [1, 1, 1]} : vector<3x4x12xf32> to vector<1x4x12xf32>
    %114 = vector.shape_cast %113 : vector<1x4x12xf32> to vector<4x12xf32>
    %cst_66 = arith.constant dense<0.000000e+00> : vector<4x256xf32>
    %115 = tpu.matmul %114, %112, %cst_66 {dimension_numbers = #tpu.dot_dimension_numbers<[1], [0], [0], [1], [0, 0, 1, 1], [], []>} : vector<4x12xf32>, vector<12x256xf32>, vector<4x256xf32> -> vector<4x256xf32>
    %116 = arith.addf %111, %115 : vector<4x256xf32>
    %c0_67 = arith.constant 0 : index
    %c32_68 = arith.constant 32 : index
    %117 = vector.load %arg4[%c0_67, %c32_68] : memref<12x288xf32, #tpu.memory_space<vmem>>, vector<12x256xf32>
    %118 = vector.extract_strided_slice %84 {offsets = [2, 0, 0], sizes = [1, 4, 12], strides = [1, 1, 1]} : vector<3x4x12xf32> to vector<1x4x12xf32>
    %119 = vector.shape_cast %118 : vector<1x4x12xf32> to vector<4x12xf32>
    %cst_69 = arith.constant dense<0.000000e+00> : vector<4x256xf32>
    %120 = tpu.matmul %119, %117, %cst_69 {dimension_numbers = #tpu.dot_dimension_numbers<[1], [0], [0], [1], [0, 0, 1, 1], [], []>} : vector<4x12xf32>, vector<12x256xf32>, vector<4x256xf32> -> vector<4x256xf32>
    %121 = arith.addf %116, %120 : vector<4x256xf32>
    %cst_70 = arith.constant dense<0.000000e+00> : vector<4xf32>
    %122 = vector.multi_reduction <add>, %121, %cst_70 [1] : vector<4x256xf32> to vector<4xf32>
    %123 = vector.shape_cast %122 : vector<4xf32> to vector<4x1xf32>
    %124 = arith.mulf %121, %121 : vector<4x256xf32>
    %cst_71 = arith.constant dense<0.000000e+00> : vector<4xf32>
    %125 = vector.multi_reduction <add>, %124, %cst_71 [1] : vector<4x256xf32> to vector<4xf32>
    %126 = vector.shape_cast %125 : vector<4xf32> to vector<4x1xf32>
    %cst_72 = arith.constant 3.906250e-03 : f32
    %127 = vector.broadcast %cst_72 : f32 to vector<4x1xf32>
    %128 = arith.mulf %123, %127 : vector<4x1xf32>
    %cst_73 = arith.constant 3.906250e-03 : f32
    %129 = vector.broadcast %cst_73 : f32 to vector<4x1xf32>
    %130 = arith.mulf %126, %129 : vector<4x1xf32>
    %131 = arith.mulf %128, %128 : vector<4x1xf32>
    %132 = arith.subf %130, %131 : vector<4x1xf32>
    %133 = vector.broadcast %128 : vector<4x1xf32> to vector<4x256xf32>
    %134 = arith.subf %121, %133 : vector<4x256xf32>
    %cst_74 = arith.constant 9.99999974E-6 : f32
    %135 = vector.broadcast %cst_74 : f32 to vector<4x1xf32>
    %136 = arith.addf %132, %135 : vector<4x1xf32>
    %137 = math.rsqrt %136 : vector<4x1xf32>
    %138 = vector.broadcast %137 : vector<4x1xf32> to vector<4x256xf32>
    %139 = arith.mulf %134, %138 : vector<4x256xf32>
    %140 = arith.addf %139, %23 : vector<4x256xf32>
    %c0_75 = arith.constant 0 : index
    %c0_76 = arith.constant 0 : index
    %c0_77 = arith.constant 0 : index
    %141 = vector.load %arg3[%c0_75, %c0_76, %c0_77] : memref<1x4x256xf32, #tpu.memory_space<vmem>>, vector<1x4x256xf32>
    %142 = vector.shape_cast %141 : vector<1x4x256xf32> to vector<4x256xf32>
    %143 = vector.shape_cast %140 : vector<4x256xf32> to vector<1x4x256xf32>
    tpu.vector_store %arg3[%c0_75, %c0_76, %c0_77], %143 {strides = array<i32>} : memref<1x4x256xf32, #tpu.memory_space<vmem>>, vector<1x4x256xf32>,
    return
  }
  func.func @transform_0(%arg0: i32) -> (i32, i32, i32) {
    %c0_i32 = arith.constant 0 : i32
    %c0_i32_0 = arith.constant 0 : i32
    %c0_i32_1 = arith.constant 0 : i32
    return %arg0, %c0_i32, %c0_i32_0 : i32, i32, i32
  }
  func.func @transform_1(%arg0: i32) -> (i32, i32, i32, i32) {
    %c0_i32 = arith.constant 0 : i32
    %c0_i32_0 = arith.constant 0 : i32
    %c0_i32_1 = arith.constant 0 : i32
    %c0_i32_2 = arith.constant 0 : i32
    %c0_i32_3 = arith.constant 0 : i32
    return %c0_i32, %c0_i32_0, %c0_i32_1, %c0_i32_2 : i32, i32, i32, i32
  }
  func.func @transform_2(%arg0: i32) -> (i32, i32, i32) {
    %c0_i32 = arith.constant 0 : i32
    %c0_i32_0 = arith.constant 0 : i32
    %c0_i32_1 = arith.constant 0 : i32
    return %arg0, %c0_i32, %c0_i32_0 : i32, i32, i32
  }
}

</mosaic_0001>

<llo_original>
// kernel: tpu_custom_call.1
$region0: #{tpu_custom_call.1}
  #allocation0 [shape = 'u32[]', space=smem, size = 0x4, offset = 0x4, fixed_abs, tag = 'smem constant byte address 0x4 - core index']
  #allocation1 [shape = 'u32[144,128]{1,0:T(1,128)}', space=vmem, size = 0x12000, scoped, tag = 'internal scratch']
  #allocation2 [shape = 'f32[12,288]{1,0:T(8,128)}', space=vmem, size = 0x6000, scoped, tag = 'scratch operand']
  %s0 = inlined_call_operand.hbm [shape: f32[2,4,256], index: 0, kind: input, shape index: {}]
  %s1 = inlined_call_operand.hbm [shape: f32[2,3,4,12], index: 1, kind: input, shape index: {}]
  %s2 = inlined_call_operand.hbm [shape: f32[2,4,256], index: 2, kind: output, shape index: {}]
  %s3 = sld [smem:[#allocation0]]
  $region49: #{tpu_custom_call.1} parent=0
    _
  %s5 = ssub.s32 1, %s3
  %s6 = scalar_select 0, %s5, %s3
  $region1: #{tpu_custom_call.1} parent=0
    #allocation3 [shape = 'u8[8192]{0}', space=vmem, size = 0x2000, scoped, tag = 'input window, operand 0']
    #allocation4 [shape = 's32[2]{0}', space=sflag, size = 0x8, scoped, tag = 'scoped memory for tpu_custom_call.1']
    #allocation5 [shape = 's32[2]{0}', space=sflag, size = 0x8, scoped, tag = 'scoped memory for tpu_custom_call.1']
    #allocation6 [shape = 'u8[12288]{0}', space=vmem, size = 0x3000, scoped, tag = 'input window, operand 1, single buffered']
    #allocation7 [shape = 's32[1]{0}', space=sflag, size = 0x4, scoped, tag = 'scoped memory for tpu_custom_call.1']
    #allocation8 [shape = 'u8[8192]{0}', space=vmem, size = 0x2000, scoped, tag = 'output window, operand 0']
    %7 = vsyncpa [#allocation4], 0
    %s8 = scalar_lea.sflag [#allocation4], 1
    %9 = vsyncpa %s8, 0
    %10 = vsyncpa [#allocation7], 0
    %11 = vsyncpa [#allocation5], 0
    %s12 = scalar_lea.sflag [#allocation5], 1
    %13 = vsyncpa %s12, 0
    loop: start=0, step=1, limit=4
    $region2: #{tpu_custom_call.1} parent=1 // loop_pre_header
      _
    $region3: #{tpu_custom_call.1} parent=1 // loop_header
      %s15 = sphi 0, %s19
      %p16 = scmp.ge.s32.totalorder %s15, 4
      %s25 = sphi 0, %s27
      %s28 = sphi 0, %s25
      %s29 = sphi 0, %s28
      %s45 = sphi 0, %s29
      %s49 = sphi 0, %s49
      %s51 = sphi 0, %s49
      %s52 = sphi 0, %s51
      %s66 = sphi 0, %s52
      %s72 = sphi 0, %s74
      %s75 = sphi 0, %s72
      %s76 = sphi 0, %s75
      %s92 = sphi 0, %s76
    $region4: #{tpu_custom_call.1} parent=1 // loop_header_branch
      %18 = sbr.rel (%p16) target = $region8
    $region5: #{tpu_custom_call.1} parent=1 // loop_body
      %s20 = ssub.s32 %s15, 1
      %s21 = ssub.s32 %s15, 2
      %s22 = sadd.s32 %s15, 1
      %s23 = ssub.s32 %s15, %s22
      %p24 = scmp.eq.s32.totalorder %s23, 0
      %s26 = sadd.s32 %s25, 1
      %s27 = scalar_select %p24, %s25, %s26
      %p30 = pneg %p24
      %p31 = scmp.eq.s32.totalorder %s15, 1
      %p32 = por %p30, %p31
      %p33 = scmp.ne.s32.totalorder %s25, %s28
      %p34 = scmp.eq.s32.totalorder %s15, 0
      %p35 = por %p33, %p34
      %p36 = scmp.ne.s32.totalorder %s25, %s28
      %p37 = scmp.eq.s32.totalorder %s20, 1
      %p38 = por %p36, %p37
      %p39 = scmp.ne.s32.totalorder %s28, %s29
      %p40 = scmp.eq.s32.totalorder %s20, 0
      %p41 = por %p39, %p40
      %p42 = scmp.ne.s32.totalorder %s28, %s29
      %p43 = scmp.eq.s32.totalorder %s21, 1
      %p44 = por %p42, %p43
      %p46 = scmp.ne.s32.totalorder %s29, %s45
      %p47 = scmp.eq.s32.totalorder %s21, 0
      %p48 = por %p46, %p47
      %s50 = sadd.s32 %s49, 1
      %p53 = scmp.eq.s32.totalorder %s15, 1
      %p54 = scmp.ne.s32.totalorder %s49, %s51
      %p55 = scmp.eq.s32.totalorder %s15, 0
      %p56 = por %p54, %p55
      %p57 = scmp.ne.s32.totalorder %s49, %s51
      %p58 = scmp.eq.s32.totalorder %s20, 1
      %p59 = por %p57, %p58
      %p60 = scmp.ne.s32.totalorder %s51, %s52
      %p61 = scmp.eq.s32.totalorder %s20, 0
      %p62 = por %p60, %p61
      %p63 = scmp.ne.s32.totalorder %s51, %s52
      %p64 = scmp.eq.s32.totalorder %s21, 1
      %p65 = por %p63, %p64
      %p67 = scmp.ne.s32.totalorder %s52, %s66
      %p68 = scmp.eq.s32.totalorder %s21, 0
      %p69 = por %p67, %p68
      %s70 = ssub.s32 %s15, %s22
      %p71 = scmp.eq.s32.totalorder %s70, 0
      %s73 = sadd.s32 %s72, 1
      %s74 = scalar_select %p71, %s72, %s73
      %p77 = pneg %p71
      %p78 = scmp.eq.s32.totalorder %s15, 1
      %p79 = por %p77, %p78
      %p80 = scmp.ne.s32.totalorder %s72, %s75
      %p81 = scmp.eq.s32.totalorder %s15, 0
      %p82 = por %p80, %p81
      %p83 = scmp.ne.s32.totalorder %s72, %s75
      %p84 = scmp.eq.s32.totalorder %s20, 1
      %p85 = por %p83, %p84
      %p86 = scmp.ne.s32.totalorder %s75, %s76
      %p87 = scmp.eq.s32.totalorder %s20, 0
      %p88 = por %p86, %p87
      %p89 = scmp.ne.s32.totalorder %s75, %s76
      %p90 = scmp.eq.s32.totalorder %s21, 1
      %p91 = por %p89, %p90
      %p93 = scmp.ne.s32.totalorder %s76, %s92
      %p94 = scmp.eq.s32.totalorder %s21, 0
      %p95 = por %p93, %p94
      %p96 = scmp.le.s32.totalorder 1, %s15
      %p97 = scmp.lt.s32.totalorder %s15, 3
      %p98 = pnand %p96, %p97
      %p99 = pneg %p98
      // Predicated region
      $region9: #{tpu_custom_call.1} parent=5 // pred_check
        _
      $region10: #{tpu_custom_call.1} parent=5 // pred_check_branch
        %101 = sbr.rel (%p98) target = $region12
      $region11: #{tpu_custom_call.1} parent=5 // pred_region
        %s102 = ssub.s32 %s15, 1
        // Predicated region
        $region13: #{tpu_custom_call.1} parent=11 // pred_check
          %p103 = pneg %p62
        $region14: #{tpu_custom_call.1} parent=11 // pred_check_branch
          %105 = sbr.rel (%p103) target = $region16
        $region15: #{tpu_custom_call.1} parent=11 // pred_region
          %s107 = ssub.s32 384, 384
          %108 = vsyncadd [#allocation7], %s107
          %s109 = sshll.u32 [#allocation6], 4
          %s110 = int_to_ptr.vmem [resolvable:$true] %s109
          %115 = dma.hbm_to_vmem [thread:$0]  %s1, 384, %s110, [#allocation7], 64, 64, 4
        $region16: #{tpu_custom_call.1} parent=11 // pred_fallthru
          _
      $region12: #{tpu_custom_call.1} parent=5 // pred_fallthru
        _
      %p116 = scmp.lt.s32.totalorder %s15, 2
      // Predicated region
      $region17: #{tpu_custom_call.1} parent=5 // pred_check
        %p117 = pneg %p116
      $region18: #{tpu_custom_call.1} parent=5 // pred_check_branch
        %119 = sbr.rel (%p117) target = $region20
      $region19: #{tpu_custom_call.1} parent=5 // pred_region
        // Predicated region
        $region21: #{tpu_custom_call.1} parent=19 // pred_check
          %p120 = pneg %p35
        $region22: #{tpu_custom_call.1} parent=19 // pred_check_branch
          %122 = sbr.rel (%p120) target = $region24
        $region23: #{tpu_custom_call.1} parent=19 // pred_region
          %s123 = sand.u32 %s25, 1
          %s124 = scalar_lea.sflag [#allocation4], %s123
          %s125 = sand.u32 %s25, 1
          %s126 = smul.addr %s125, 8
          %s127 = scalar_lea.vmem [#allocation3], %s126
          %s129 = ssub.s32 128, 128
          %130 = vsyncadd %s124, %s129
          %s131 = smul.addr %s15, 2
          %s132 = smul.addr %s131, 64
          %s133 = scalar_lea.hbm %s0, %s132
          %s135 = sshll.u32 %s127, 4
          %s136 = int_to_ptr.vmem [resolvable:$true] %s135
          %138 = dma.hbm_to_vmem [thread:$0]  %s133, 128, %s136, %s124
        $region24: #{tpu_custom_call.1} parent=19 // pred_fallthru
          _
      $region20: #{tpu_custom_call.1} parent=5 // pred_fallthru
        _
      %p139 = scmp.le.s32.totalorder 1, %s15
      %p140 = scmp.lt.s32.totalorder %s15, 3
      %p141 = pnand %p139, %p140
      %p142 = pneg %p141
      // Predicated region
      $region25: #{tpu_custom_call.1} parent=5 // pred_check
        _
      $region26: #{tpu_custom_call.1} parent=5 // pred_check_branch
        %144 = sbr.rel (%p141) target = $region28
      $region27: #{tpu_custom_call.1} parent=5 // pred_region
        %s145 = ssub.s32 %s15, 1
        %s146 = sand.u32 %s28, 1
        %s147 = scalar_lea.sflag [#allocation4], %s146
        %s148 = sand.u32 %s28, 1
        %s149 = smul.addr %s148, 8
        %s150 = scalar_lea.vmem [#allocation3], %s149
        // Predicated region
        $region29: #{tpu_custom_call.1} parent=27 // pred_check
          %p151 = pneg %p41
        $region30: #{tpu_custom_call.1} parent=27 // pred_check_branch
          %153 = sbr.rel (%p151) target = $region32
        $region31: #{tpu_custom_call.1} parent=27 // pred_region
          %154 = dma.done %s147, 128
        $region32: #{tpu_custom_call.1} parent=27 // pred_fallthru
          _
        // Predicated region
        $region33: #{tpu_custom_call.1} parent=27 // pred_check
          %p155 = pneg %p62
        $region34: #{tpu_custom_call.1} parent=27 // pred_check_branch
          %157 = sbr.rel (%p155) target = $region36
        $region35: #{tpu_custom_call.1} parent=27 // pred_region
          %158 = dma.done [#allocation7], 384
        $region36: #{tpu_custom_call.1} parent=27 // pred_fallthru
          _
        %s159 = sand.u32 %s28, 1
        %s160 = scalar_lea.sflag [#allocation4], %s159
        %s161 = sand.u32 %s28, 1
        %s162 = smul.addr %s161, 8
        %s163 = scalar_lea.vmem [#allocation3], %s162
        %p164 = pneg %p41
        %p165 = pneg %p38
        %p166 = pneg %p62
        %p167 = pneg %p59
        %p168 = pneg %p88
        %p169 = pneg %p85
        %s170 = sand.u32 %s75, 1
        %s171 = scalar_lea.sflag [#allocation5], %s170
        %s172 = sand.u32 %s75, 1
        %s173 = smul.addr %s172, 8
        %s174 = scalar_lea.vmem [#allocation8], %s173
        %v175 = vlaneseq
        %v176 = vand.u32 %v175, 127
        %v177 = vadd.s32 %v176, 128
        %vm178 = vcmp.lt.s32.totalorder %v176, 0
        %v179 = vsub.s32 0, %v176
        %v180 = vsel %vm178, %v179, %v176
        %v181 = vshrl.u32 %v180, 4
        %v182 = vand.u32 %v180, 15
        %v183 = vsub.s32 0, %v182
        %v184 = vsel %vm178, %v183, %v182
        %vm185 = vcmp.lt.s32.totalorder %v177, 0
        %v186 = vsub.s32 0, %v177
        %v187 = vsel %vm185, %v186, %v177
        %v188 = vshrl.u32 %v187, 4
        %v189 = vand.u32 %v187, 15
        %v190 = vsub.s32 0, %v189
        %v191 = vsel %vm185, %v190, %v189
        %vm192 = vcmp.ne.s32.totalorder %v184, 0
        %vm193 = vcmp.ne.s32.totalorder %v191, 0
        %vm194 = vcmp.lt.s32.totalorder %v184, 0
        %vm195 = vcmp.lt.s32.totalorder %v191, 0
        %vm196 = vmand %vm194, %vm192
        %vm197 = vmand %vm195, %vm193
        %v198 = vadd.s32 %v184, 16
        %v199 = vadd.s32 %v191, 16
        %v200 = vsel %vm196, %v198, %v184
        %v201 = vsel %vm197, %v199, %v191
        %vm202 = vcmp.eq.s32.totalorder %v200, 0
        %vm203 = vcmp.eq.s32.totalorder %v201, 0
        %vm204 = vcmp.eq.s32.totalorder %v200, 15
        %vm205 = vcmp.eq.s32.totalorder %v201, 15
        %v206 = vld [vmem:[#allocation6] sm:$0xf]
        %v207 = vld [vmem:[#allocation6 + $0x4] sm:$0xf]
        %v208 = vld [vmem:[#allocation6 + $0x8] sm:$0xf]
        %v209 = vld [vmem:[#allocation6 + $0xc] sm:$0xf]
        %v210 = vld [vmem:[#allocation6 + $0x10] sm:$0xf]
        %v211 = vld [vmem:[#allocation6 + $0x14] sm:$0xf]
        %v212 = vld [vmem:[%s150] sm:$0xff]
        %v214 = vcombine.low %v212, %v212
        %215 = vrot.lane.b32.xlu0 %v214, 112
        %v216 = vpop.permute.xlu0 %215
        %vm218 = vcmask 130052
        %219 = vst.msk [vmem:[#allocation2] sm:$0xf0] %vm218, %v216
        %220 = vrot.lane.b32.xlu0 %v214, 16
        %v221 = vpop.permute.xlu0 %220
        %222 = vrot.lane.b32.xlu0 %v212, 16
        %v223 = vpop.permute.xlu0 %222
        %vm224 = vcmask 130048
        %v225 = vsel %vm224, %v221, %v223
        %vm229 = vcmask 1047684
        %230 = vst.msk [vmem:[#allocation2] sm:$0xf0] %vm229, %v221
        %231 = vst [vmem:[#allocation2 + $0x8] sm:$0xf0] %v225
        %232 = vst.msk [vmem:[#allocation2 + $0x10] sm:$0xf0] %vm218, %v223
        %233 = vrot.lane.b32.xlu0 %v212, 48
        %v234 = vpop.permute.xlu0 %233
        %vm236 = vcmask 261252
        %237 = vst.msk [vmem:[#allocation2 + $0x10] sm:$0xf0] %vm236, %v234
        %v238 = vld [vmem:[#allocation2] sm:$0xf0]
        %v239 = vld [vmem:[#allocation2 + $0x8] sm:$0xf0]
        %v240 = vld [vmem:[#allocation2 + $0x10] sm:$0xf0]
        %v241 = vsel %vm202, 1, 0
        %v242 = vsel %vm203, 1, 0
        %vm243 = vcmp.eq.s32.totalorder %v241, 1
        %vm244 = vcmp.eq.s32.totalorder %v242, 1
        %v248 = vrot.slane %v238, 4
        %v249 = vrot.slane %v239, 4
        %v250 = vrot.slane %v240, 4
        %251 = vrot.lane.b32.xlu0 %v248, 111
        %v252 = vpop.permute.xlu0 %251
        %253 = vrot.lane.b32.xlu0 %v249, 111
        %v254 = vpop.permute.xlu0 %253
        %255 = vrot.lane.b32.xlu0 %v250, 111
        %v256 = vpop.permute.xlu0 %255
        %vm257 = vcmask 908288
        %v258 = vsel %vm257, %v252, %v254
        %v259 = vsel %vm257, %v254, %v256
        %262 = vrot.lane.b32.xlu0 %v248, 113
        %v263 = vpop.permute.xlu0 %262
        %264 = vrot.lane.b32.xlu0 %v249, 113
        %v265 = vpop.permute.xlu0 %264
        %266 = vrot.lane.b32.xlu0 %v250, 113
        %v267 = vpop.permute.xlu0 %266
        %vm268 = vcmask 924672
        %v269 = vsel %vm268, %v263, %v265
        %v270 = vsel %vm268, %v265, %v267
        %v273 = vsel %vm243, %v258, %v269
        %v274 = vsel %vm244, %v259, %v270
        %276 = vrot.lane.b32.xlu0 %v273, 112
        %v277 = vpop.permute.xlu0 %276
        %vm279 = vcmask 125952
        %280 = vst.msk [vmem:[#allocation2] sm:$0xf] %vm279, %v277
        %282 = vrot.lane.b32.xlu0 %v273, 16
        %v283 = vpop.permute.xlu0 %282
        %284 = vrot.lane.b32.xlu0 %v274, 16
        %v285 = vpop.permute.xlu0 %284
        %v286 = vsel %vm224, %v283, %v285
        %vm290 = vcmask 1043584
        %291 = vst.msk [vmem:[#allocation2] sm:$0xf] %vm290, %v283
        %292 = vst [vmem:[#allocation2 + $0x8] sm:$0xf] %v286
        %293 = vst.msk [vmem:[#allocation2 + $0x10] sm:$0xf] %vm279, %v285
        %294 = vrot.lane.b32.xlu0 %v274, 48
        %v295 = vpop.permute.xlu0 %294
        %vm297 = vcmask 257152
        %298 = vst.msk [vmem:[#allocation2 + $0x10] sm:$0xf] %vm297, %v295
        %v299 = vsel %vm204, 1, 0
        %v300 = vsel %vm205, 1, 0
        %vm301 = vcmp.eq.s32.totalorder %v299, 1
        %vm302 = vcmp.eq.s32.totalorder %v300, 1
        %v303 = vsel %vm301, %v269, %v258
        %v304 = vsel %vm302, %v270, %v259
        %306 = vrot.lane.b32.xlu0 %v303, 112
        %v307 = vpop.permute.xlu0 %306
        %309 = vst.msk [vmem:[#allocation2 + $0x18] sm:$0xf] %vm279, %v307
        %311 = vrot.lane.b32.xlu0 %v303, 16
        %v312 = vpop.permute.xlu0 %311
        %313 = vrot.lane.b32.xlu0 %v304, 16
        %v314 = vpop.permute.xlu0 %313
        %v315 = vsel %vm224, %v312, %v314
        %319 = vst.msk [vmem:[#allocation2 + $0x18] sm:$0xf] %vm290, %v312
        %320 = vst [vmem:[#allocation2 + $0x20] sm:$0xf] %v315
        %321 = vst.msk [vmem:[#allocation2 + $0x28] sm:$0xf] %vm279, %v314
        %322 = vrot.lane.b32.xlu0 %v304, 48
        %v323 = vpop.permute.xlu0 %322
        %325 = vst.msk [vmem:[#allocation2 + $0x28] sm:$0xf] %vm297, %v323
        %v326 = vld [vmem:[#allocation2] sm:$0xff]
        %v327 = vld [vmem:[#allocation2 + $0x8] sm:$0xff]
        %v328 = vld [vmem:[#allocation2 + $0x18] sm:$0xf]
        %v329 = vld [vmem:[#allocation2 + $0x20] sm:$0xf]
        %v330 = vld [vmem:[#allocation2 + $0x10] sm:$0xff]
        %v331 = vld [vmem:[#allocation2 + $0x28] sm:$0xf]
        %338 = vrot.lane.b32.xlu0 %v326, 112
        %v339 = vpop.permute.xlu0 %338
        %340 = vrot.lane.b32.xlu0 %v327, 112
        %v341 = vpop.permute.xlu0 %340
        %342 = vrot.lane.b32.xlu0 %v330, 112
        %v343 = vpop.permute.xlu0 %342
        %344 = vrot.lane.b32.xlu0 %v328, 112
        %v345 = vpop.permute.xlu0 %344
        %346 = vrot.lane.b32.xlu0 %v329, 112
        %v347 = vpop.permute.xlu0 %346
        %348 = vrot.lane.b32.xlu0 %v331, 112
        %v349 = vpop.permute.xlu0 %348
        %vm350 = vcmask 916480
        %v351 = vsel %vm350, %v339, %v341
        %v352 = vsel %vm350, %v341, %v343
        %v353 = vsel %vm350, %v345, %v347
        %v354 = vsel %vm350, %v347, %v349
        %vm357 = vcmask 97280
        %v359 = vsel %vm357, %v207, 0
        %vm361 = vcmask 1043456
        %v362 = vsel %vm361, %v353, 0
        %v364 = vsel %vm361, %v354, 0
        %366 = vmatprep.subr.mxu0 %v352
        %367 = vmatpush1.msra.mxu0 %v351
        %368 = vmatprep.subr.mxu0 %v364
        %369 = vmatpush1.msra.mxu0 %v362
        %370 = vmatprep.subr.mxu0 0.0
        %371 = vmatpush1.msra.mxu0 0.0
        %372 = vmatprep.subr.mxu0 0.0
        %373 = vmatpush1.msra.mxu0 0.0
        %374 = vmatprep.subr.mxu0 0.0
        %375 = vmatpush1.msra.mxu0 0.0
        %376 = vmatprep.subr.mxu0 0.0
        %377 = vmatpush1.msra.mxu0 0.0
        %378 = vmatprep.subr.mxu0 0.0
        %379 = vmatpush1.msra.mxu0 0.0
        %380 = vmatprep.subr.mxu0 0.0
        %381 = vmatpush1.msra.mxu0 0.0
        %382 = vmatprep.subr.mxu0 0.0
        %383 = vmatpush1.msra.mxu0 0.0
        %384 = vmatprep.subr.mxu0 0.0
        %385 = vmatpush1.msra.mxu0 0.0
        %386 = vmatprep.subr.mxu0 0.0
        %387 = vmatpush1.msra.mxu0 0.0
        %388 = vmatprep.subr.mxu0 0.0
        %389 = vmatpush1.msra.mxu0 0.0
        %390 = vmatprep.subr.mxu0 0.0
        %391 = vmatpush1.msra.mxu0 0.0
        %392 = vmatprep.subr.mxu0 0.0
        %393 = vmatpush1.msra.mxu0 0.0
        %394 = vmatprep.subr.mxu0 0.0
        %395 = vmatpush1.msra.mxu0 0.0
        %396 = vmatprep.subr.mxu0 0.0
        %397 = vmatpush1.msra.mxu0 0.0
        %398 = vmatprep.subr.mxu0 0.0
        %399 = vmatpush1.msra.mxu0 0.0
        %400 = vmatprep.subr.mxu0 0.0
        %401 = vmatpush1.msra.mxu0 0.0
        %402 = vmatprep.subr.mxu0 0.0
        %403 = vmatpush1.msra.mxu0 0.0
        %404 = vmatprep.subr.mxu0 0.0
        %405 = vmatpush1.msra.mxu0 0.0
        %406 = vmatprep.subr.mxu0 0.0
        %407 = vmatpush1.msra.mxu0 0.0
        %408 = vmatprep.subr.mxu0 0.0
        %409 = vmatpush1.msra.mxu0 0.0
        %410 = vmatprep.subr.mxu0 0.0
        %411 = vmatpush1.msra.mxu0 0.0
        %412 = vmatprep.subr.mxu0 0.0
        %413 = vmatpush1.msra.mxu0 0.0
        %414 = vmatprep.subr.mxu0 0.0
        %415 = vmatpush1.msra.mxu0 0.0
        %416 = vmatprep.subr.mxu0 0.0
        %417 = vmatpush1.msra.mxu0 0.0
        %418 = vmatprep.subr.mxu0 0.0
        %419 = vmatpush1.msra.mxu0 0.0
        %420 = vmatprep.subr.mxu0 0.0
        %421 = vmatpush1.msra.mxu0 0.0
        %422 = vmatprep.subr.mxu0 0.0
        %423 = vmatpush1.msra.mxu0 0.0
        %424 = vmatprep.subr.mxu0 0.0
        %425 = vmatpush1.msra.mxu0 0.0
        %426 = vmatprep.subr.mxu0 0.0
        %427 = vmatpush1.msra.mxu0 0.0
        %428 = vmatprep.subr.mxu0 0.0
        %429 = vmatpush1.msra.mxu0 0.0
        %430 = vmatprep.mubr.f32.mxu0 0.0
        %431 = vmatmul.mubr.f32.gmra.mrb[0].mxu0 %v359
        %v432 = vpop.f32.mrb[0].mxu0
        %v433 = vadd.f32 0.0, %v432
        %v434 = vpop.f32.mrb[0].mxu0
        %v435 = vadd.f32 0.0, %v434
        %436 = vdwg.mxu0
        %v438 = vsel %vm357, %v206, 0
        %v440 = vsel %vm361, %v328, 0
        %v442 = vsel %vm361, %v329, 0
        %444 = vmatprep.subr.mxu0 %v327
        %445 = vmatpush1.msra.mxu0 %v326
        %446 = vmatprep.subr.mxu0 %v442
        %447 = vmatpush1.msra.mxu0 %v440
        %448 = vmatprep.subr.mxu0 0.0
        %449 = vmatpush1.msra.mxu0 0.0
        %450 = vmatprep.subr.mxu0 0.0
        %451 = vmatpush1.msra.mxu0 0.0
        %452 = vmatprep.subr.mxu0 0.0
        %453 = vmatpush1.msra.mxu0 0.0
        %454 = vmatprep.subr.mxu0 0.0
        %455 = vmatpush1.msra.mxu0 0.0
        %456 = vmatprep.subr.mxu0 0.0
        %457 = vmatpush1.msra.mxu0 0.0
        %458 = vmatprep.subr.mxu0 0.0
        %459 = vmatpush1.msra.mxu0 0.0
        %460 = vmatprep.subr.mxu0 0.0
        %461 = vmatpush1.msra.mxu0 0.0
        %462 = vmatprep.subr.mxu0 0.0
        %463 = vmatpush1.msra.mxu0 0.0
        %464 = vmatprep.subr.mxu0 0.0
        %465 = vmatpush1.msra.mxu0 0.0
        %466 = vmatprep.subr.mxu0 0.0
        %467 = vmatpush1.msra.mxu0 0.0
        %468 = vmatprep.subr.mxu0 0.0
        %469 = vmatpush1.msra.mxu0 0.0
        %470 = vmatprep.subr.mxu0 0.0
        %471 = vmatpush1.msra.mxu0 0.0
        %472 = vmatprep.subr.mxu0 0.0
        %473 = vmatpush1.msra.mxu0 0.0
        %474 = vmatprep.subr.mxu0 0.0
        %475 = vmatpush1.msra.mxu0 0.0
        %476 = vmatprep.subr.mxu0 0.0
        %477 = vmatpush1.msra.mxu0 0.0
        %478 = vmatprep.subr.mxu0 0.0
        %479 = vmatpush1.msra.mxu0 0.0
        %480 = vmatprep.subr.mxu0 0.0
        %481 = vmatpush1.msra.mxu0 0.0
        %482 = vmatprep.subr.mxu0 0.0
        %483 = vmatpush1.msra.mxu0 0.0
        %484 = vmatprep.subr.mxu0 0.0
        %485 = vmatpush1.msra.mxu0 0.0
        %486 = vmatprep.subr.mxu0 0.0
        %487 = vmatpush1.msra.mxu0 0.0
        %488 = vmatprep.subr.mxu0 0.0
        %489 = vmatpush1.msra.mxu0 0.0
        %490 = vmatprep.subr.mxu0 0.0
        %491 = vmatpush1.msra.mxu0 0.0
        %492 = vmatprep.subr.mxu0 0.0
        %493 = vmatpush1.msra.mxu0 0.0
        %494 = vmatprep.subr.mxu0 0.0
        %495 = vmatpush1.msra.mxu0 0.0
        %496 = vmatprep.subr.mxu0 0.0
        %497 = vmatpush1.msra.mxu0 0.0
        %498 = vmatprep.subr.mxu0 0.0
        %499 = vmatpush1.msra.mxu0 0.0
        %500 = vmatprep.subr.mxu0 0.0
        %501 = vmatpush1.msra.mxu0 0.0
        %502 = vmatprep.subr.mxu0 0.0
        %503 = vmatpush1.msra.mxu0 0.0
        %504 = vmatprep.subr.mxu0 0.0
        %505 = vmatpush1.msra.mxu0 0.0
        %506 = vmatprep.subr.mxu0 0.0
        %507 = vmatpush1.msra.mxu0 0.0
        %508 = vmatprep.mubr.f32.mxu0 0.0
        %509 = vmatmul.mubr.f32.gmra.mrb[0].mxu0 %v438
        %v510 = vpop.f32.mrb[0].mxu0
        %v511 = vadd.f32 %v433, %v510
        %v512 = vpop.f32.mrb[0].mxu0
        %v513 = vadd.f32 %v435, %v512
        %514 = vdwg.mxu0
        %515 = vrot.lane.b32.xlu0 %v326, 96
        %v516 = vpop.permute.xlu0 %515
        %517 = vrot.lane.b32.xlu0 %v327, 96
        %v518 = vpop.permute.xlu0 %517
        %519 = vrot.lane.b32.xlu0 %v330, 96
        %v520 = vpop.permute.xlu0 %519
        %521 = vrot.lane.b32.xlu0 %v328, 96
        %v522 = vpop.permute.xlu0 %521
        %523 = vrot.lane.b32.xlu0 %v329, 96
        %v524 = vpop.permute.xlu0 %523
        %525 = vrot.lane.b32.xlu0 %v331, 96
        %v526 = vpop.permute.xlu0 %525
        %vm527 = vcmask 785408
        %v528 = vsel %vm527, %v516, %v518
        %v529 = vsel %vm527, %v518, %v520
        %v530 = vsel %vm527, %v522, %v524
        %v531 = vsel %vm527, %v524, %v526
        %v535 = vsel %vm357, %v208, 0
        %v537 = vsel %vm361, %v530, 0
        %v539 = vsel %vm361, %v531, 0
        %541 = vmatprep.subr.mxu0 %v529
        %542 = vmatpush1.msra.mxu0 %v528
        %543 = vmatprep.subr.mxu0 %v539
        %544 = vmatpush1.msra.mxu0 %v537
        %545 = vmatprep.subr.mxu0 0.0
        %546 = vmatpush1.msra.mxu0 0.0
        %547 = vmatprep.subr.mxu0 0.0
        %548 = vmatpush1.msra.mxu0 0.0
        %549 = vmatprep.subr.mxu0 0.0
        %550 = vmatpush1.msra.mxu0 0.0
        %551 = vmatprep.subr.mxu0 0.0
        %552 = vmatpush1.msra.mxu0 0.0
        %553 = vmatprep.subr.mxu0 0.0
        %554 = vmatpush1.msra.mxu0 0.0
        %555 = vmatprep.subr.mxu0 0.0
        %556 = vmatpush1.msra.mxu0 0.0
        %557 = vmatprep.subr.mxu0 0.0
        %558 = vmatpush1.msra.mxu0 0.0
        %559 = vmatprep.subr.mxu0 0.0
        %560 = vmatpush1.msra.mxu0 0.0
        %561 = vmatprep.subr.mxu0 0.0
        %562 = vmatpush1.msra.mxu0 0.0
        %563 = vmatprep.subr.mxu0 0.0
        %564 = vmatpush1.msra.mxu0 0.0
        %565 = vmatprep.subr.mxu0 0.0
        %566 = vmatpush1.msra.mxu0 0.0
        %567 = vmatprep.subr.mxu0 0.0
        %568 = vmatpush1.msra.mxu0 0.0
        %569 = vmatprep.subr.mxu0 0.0
        %570 = vmatpush1.msra.mxu0 0.0
        %571 = vmatprep.subr.mxu0 0.0
        %572 = vmatpush1.msra.mxu0 0.0
        %573 = vmatprep.subr.mxu0 0.0
        %574 = vmatpush1.msra.mxu0 0.0
        %575 = vmatprep.subr.mxu0 0.0
        %576 = vmatpush1.msra.mxu0 0.0
        %577 = vmatprep.subr.mxu0 0.0
        %578 = vmatpush1.msra.mxu0 0.0
        %579 = vmatprep.subr.mxu0 0.0
        %580 = vmatpush1.msra.mxu0 0.0
        %581 = vmatprep.subr.mxu0 0.0
        %582 = vmatpush1.msra.mxu0 0.0
        %583 = vmatprep.subr.mxu0 0.0
        %584 = vmatpush1.msra.mxu0 0.0
        %585 = vmatprep.subr.mxu0 0.0
        %586 = vmatpush1.msra.mxu0 0.0
        %587 = vmatprep.subr.mxu0 0.0
        %588 = vmatpush1.msra.mxu0 0.0
        %589 = vmatprep.subr.mxu0 0.0
        %590 = vmatpush1.msra.mxu0 0.0
        %591 = vmatprep.subr.mxu0 0.0
        %592 = vmatpush1.msra.mxu0 0.0
        %593 = vmatprep.subr.mxu0 0.0
        %594 = vmatpush1.msra.mxu0 0.0
        %595 = vmatprep.subr.mxu0 0.0
        %596 = vmatpush1.msra.mxu0 0.0
        %597 = vmatprep.subr.mxu0 0.0
        %598 = vmatpush1.msra.mxu0 0.0
        %599 = vmatprep.subr.mxu0 0.0
        %600 = vmatpush1.msra.mxu0 0.0
        %601 = vmatprep.subr.mxu0 0.0
        %602 = vmatpush1.msra.mxu0 0.0
        %603 = vmatprep.subr.mxu0 0.0
        %604 = vmatpush1.msra.mxu0 0.0
        %605 = vmatprep.mubr.f32.mxu0 0.0
        %606 = vmatmul.mubr.f32.gmra.mrb[0].mxu0 %v535
        %v607 = vpop.f32.mrb[0].mxu0
        %v608 = vadd.f32 0.0, %v607
        %v609 = vpop.f32.mrb[0].mxu0
        %v610 = vadd.f32 0.0, %v609
        %611 = vdwg.mxu0
        %v612 = vadd.f32 %v511, %v608
        %v613 = vadd.f32 %v513, %v610
        %v614 = vsel %vm361, %v612, 0.0
        %v615 = vsel %vm361, %v613, 0.0
        %v616 = vadd.f32 %v614, %v615
        %617 = vadd.xlane.f32.xlu0 %v616
        %v618 = vpop.xlane.xlu0 %617
        %v619 = vmul.f32 %v612, %v612
        %v620 = vmul.f32 %v613, %v613
        %v621 = vsel %vm361, %v619, 0.0
        %v622 = vsel %vm361, %v620, 0.0
        %v623 = vadd.f32 %v621, %v622
        %624 = vadd.xlane.f32.xlu0 %v623
        %v625 = vpop.xlane.xlu0 %624
        %v626 = vmul.f32 %v618, 0.00390625
        %v627 = vmul.f32 %v625, 0.00390625
        %v628 = vmul.f32 %v626, %v626
        %v629 = vsub.f32 %v627, %v628
        %v630 = vsub.f32 %v612, %v626
        %v631 = vsub.f32 %v613, %v626
        %v632 = vadd.f32 %v629, 1e-05
        %v633 = vrsqrt.pop %v632
        %v634 = vmul.f32 %v630, %v633
        %v635 = vmul.f32 %v631, %v633
        %v636 = vmax.f32 %v634, 0.0
        %v637 = vmax.f32 %v635, 0.0
        %v639 = vrot.slane %v636, 4
        %640 = vrot.lane.b32.xlu0 %v639, 112
        %v641 = vpop.permute.xlu0 %640
        %643 = vst.msk [vmem:[#allocation2] sm:$0xf0] %vm218, %v641
        %v645 = vrot.slane %v637, 4
        %646 = vrot.lane.b32.xlu0 %v639, 16
        %v647 = vpop.permute.xlu0 %646
        %648 = vrot.lane.b32.xlu0 %v645, 16
        %v649 = vpop.permute.xlu0 %648
        %v650 = vsel %vm224, %v647, %v649
        %654 = vst.msk [vmem:[#allocation2] sm:$0xf0] %vm229, %v647
        %655 = vst [vmem:[#allocation2 + $0x8] sm:$0xf0] %v650
        %656 = vst.msk [vmem:[#allocation2 + $0x10] sm:$0xf0] %vm218, %v649
        %657 = vrot.lane.b32.xlu0 %v645, 48
        %v658 = vpop.permute.xlu0 %657
        %660 = vst.msk [vmem:[#allocation2 + $0x10] sm:$0xf0] %vm236, %v658
        %v661 = vld [vmem:[#allocation2] sm:$0xf0]
        %v662 = vld [vmem:[#allocation2 + $0x8] sm:$0xf0]
        %v663 = vld [vmem:[#allocation2 + $0x10] sm:$0xf0]
        %v667 = vrot.slane %v661, 4
        %v668 = vrot.slane %v662, 4
        %v669 = vrot.slane %v663, 4
        %670 = vrot.lane.b32.xlu0 %v667, 111
        %v671 = vpop.permute.xlu0 %670
        %672 = vrot.lane.b32.xlu0 %v668, 111
        %v673 = vpop.permute.xlu0 %672
        %674 = vrot.lane.b32.xlu0 %v669, 111
        %v675 = vpop.permute.xlu0 %674
        %v676 = vsel %vm257, %v671, %v673
        %v677 = vsel %vm257, %v673, %v675
        %680 = vrot.lane.b32.xlu0 %v667, 113
        %v681 = vpop.permute.xlu0 %680
        %682 = vrot.lane.b32.xlu0 %v668, 113
        %v683 = vpop.permute.xlu0 %682
        %684 = vrot.lane.b32.xlu0 %v669, 113
        %v685 = vpop.permute.xlu0 %684
        %v686 = vsel %vm268, %v681, %v683
        %v687 = vsel %vm268, %v683, %v685
        %v690 = vsel %vm243, %v676, %v686
        %v691 = vsel %vm244, %v677, %v687
        %693 = vrot.lane.b32.xlu0 %v690, 112
        %v694 = vpop.permute.xlu0 %693
        %696 = vst.msk [vmem:[#allocation2] sm:$0xf] %vm279, %v694
        %698 = vrot.lane.b32.xlu0 %v690, 16
        %v699 = vpop.permute.xlu0 %698
        %700 = vrot.lane.b32.xlu0 %v691, 16
        %v701 = vpop.permute.xlu0 %700
        %v702 = vsel %vm224, %v699, %v701
        %706 = vst.msk [vmem:[#allocation2] sm:$0xf] %vm290, %v699
        %707 = vst [vmem:[#allocation2 + $0x8] sm:$0xf] %v702
        %708 = vst.msk [vmem:[#allocation2 + $0x10] sm:$0xf] %vm279, %v701
        %709 = vrot.lane.b32.xlu0 %v691, 48
        %v710 = vpop.permute.xlu0 %709
        %712 = vst.msk [vmem:[#allocation2 + $0x10] sm:$0xf] %vm297, %v710
        %v713 = vsel %vm301, %v686, %v676
        %v714 = vsel %vm302, %v687, %v677
        %716 = vrot.lane.b32.xlu0 %v713, 112
        %v717 = vpop.permute.xlu0 %716
        %719 = vst.msk [vmem:[#allocation2 + $0x18] sm:$0xf] %vm279, %v717
        %721 = vrot.lane.b32.xlu0 %v713, 16
        %v722 = vpop.permute.xlu0 %721
        %723 = vrot.lane.b32.xlu0 %v714, 16
        %v724 = vpop.permute.xlu0 %723
        %v725 = vsel %vm224, %v722, %v724
        %729 = vst.msk [vmem:[#allocation2 + $0x18] sm:$0xf] %vm290, %v722
        %730 = vst [vmem:[#allocation2 + $0x20] sm:$0xf] %v725
        %731 = vst.msk [vmem:[#allocation2 + $0x28] sm:$0xf] %vm279, %v724
        %732 = vrot.lane.b32.xlu0 %v714, 48
        %v733 = vpop.permute.xlu0 %732
        %735 = vst.msk [vmem:[#allocation2 + $0x28] sm:$0xf] %vm297, %v733
        %v736 = vld [vmem:[#allocation2] sm:$0xff]
        %v737 = vld [vmem:[#allocation2 + $0x8] sm:$0xff]
        %v738 = vld [vmem:[#allocation2 + $0x18] sm:$0xf]
        %v739 = vld [vmem:[#allocation2 + $0x20] sm:$0xf]
        %v740 = vld [vmem:[#allocation2 + $0x10] sm:$0xff]
        %v741 = vld [vmem:[#allocation2 + $0x28] sm:$0xf]
        %748 = vrot.lane.b32.xlu0 %v736, 112
        %v749 = vpop.permute.xlu0 %748
        %750 = vrot.lane.b32.xlu0 %v737, 112
        %v751 = vpop.permute.xlu0 %750
        %752 = vrot.lane.b32.xlu0 %v740, 112
        %v753 = vpop.permute.xlu0 %752
        %754 = vrot.lane.b32.xlu0 %v738, 112
        %v755 = vpop.permute.xlu0 %754
        %756 = vrot.lane.b32.xlu0 %v739, 112
        %v757 = vpop.permute.xlu0 %756
        %758 = vrot.lane.b32.xlu0 %v741, 112
        %v759 = vpop.permute.xlu0 %758
        %v760 = vsel %vm350, %v749, %v751
        %v761 = vsel %vm350, %v751, %v753
        %v762 = vsel %vm350, %v755, %v757
        %v763 = vsel %vm350, %v757, %v759
        %v767 = vsel %vm357, %v210, 0
        %v769 = vsel %vm361, %v762, 0
        %v771 = vsel %vm361, %v763, 0
        %773 = vmatprep.subr.mxu0 %v761
        %774 = vmatpush1.msra.mxu0 %v760
        %775 = vmatprep.subr.mxu0 %v771
        %776 = vmatpush1.msra.mxu0 %v769
        %777 = vmatprep.subr.mxu0 0.0
        %778 = vmatpush1.msra.mxu0 0.0
        %779 = vmatprep.subr.mxu0 0.0
        %780 = vmatpush1.msra.mxu0 0.0
        %781 = vmatprep.subr.mxu0 0.0
        %782 = vmatpush1.msra.mxu0 0.0
        %783 = vmatprep.subr.mxu0 0.0
        %784 = vmatpush1.msra.mxu0 0.0
        %785 = vmatprep.subr.mxu0 0.0
        %786 = vmatpush1.msra.mxu0 0.0
        %787 = vmatprep.subr.mxu0 0.0
        %788 = vmatpush1.msra.mxu0 0.0
        %789 = vmatprep.subr.mxu0 0.0
        %790 = vmatpush1.msra.mxu0 0.0
        %791 = vmatprep.subr.mxu0 0.0
        %792 = vmatpush1.msra.mxu0 0.0
        %793 = vmatprep.subr.mxu0 0.0
        %794 = vmatpush1.msra.mxu0 0.0
        %795 = vmatprep.subr.mxu0 0.0
        %796 = vmatpush1.msra.mxu0 0.0
        %797 = vmatprep.subr.mxu0 0.0
        %798 = vmatpush1.msra.mxu0 0.0
        %799 = vmatprep.subr.mxu0 0.0
        %800 = vmatpush1.msra.mxu0 0.0
        %801 = vmatprep.subr.mxu0 0.0
        %802 = vmatpush1.msra.mxu0 0.0
        %803 = vmatprep.subr.mxu0 0.0
        %804 = vmatpush1.msra.mxu0 0.0
        %805 = vmatprep.subr.mxu0 0.0
        %806 = vmatpush1.msra.mxu0 0.0
        %807 = vmatprep.subr.mxu0 0.0
        %808 = vmatpush1.msra.mxu0 0.0
        %809 = vmatprep.subr.mxu0 0.0
        %810 = vmatpush1.msra.mxu0 0.0
        %811 = vmatprep.subr.mxu0 0.0
        %812 = vmatpush1.msra.mxu0 0.0
        %813 = vmatprep.subr.mxu0 0.0
        %814 = vmatpush1.msra.mxu0 0.0
        %815 = vmatprep.subr.mxu0 0.0
        %816 = vmatpush1.msra.mxu0 0.0
        %817 = vmatprep.subr.mxu0 0.0
        %818 = vmatpush1.msra.mxu0 0.0
        %819 = vmatprep.subr.mxu0 0.0
        %820 = vmatpush1.msra.mxu0 0.0
        %821 = vmatprep.subr.mxu0 0.0
        %822 = vmatpush1.msra.mxu0 0.0
        %823 = vmatprep.subr.mxu0 0.0
        %824 = vmatpush1.msra.mxu0 0.0
        %825 = vmatprep.subr.mxu0 0.0
        %826 = vmatpush1.msra.mxu0 0.0
        %827 = vmatprep.subr.mxu0 0.0
        %828 = vmatpush1.msra.mxu0 0.0
        %829 = vmatprep.subr.mxu0 0.0
        %830 = vmatpush1.msra.mxu0 0.0
        %831 = vmatprep.subr.mxu0 0.0
        %832 = vmatpush1.msra.mxu0 0.0
        %833 = vmatprep.subr.mxu0 0.0
        %834 = vmatpush1.msra.mxu0 0.0
        %835 = vmatprep.subr.mxu0 0.0
        %836 = vmatpush1.msra.mxu0 0.0
        %837 = vmatprep.mubr.f32.mxu0 0.0
        %838 = vmatmul.mubr.f32.gmra.mrb[0].mxu0 %v767
        %v839 = vpop.f32.mrb[0].mxu0
        %v840 = vadd.f32 0.0, %v839
        %v841 = vpop.f32.mrb[0].mxu0
        %v842 = vadd.f32 0.0, %v841
        %843 = vdwg.mxu0
        %v845 = vsel %vm357, %v209, 0
        %v847 = vsel %vm361, %v738, 0
        %v849 = vsel %vm361, %v739, 0
        %851 = vmatprep.subr.mxu0 %v737
        %852 = vmatpush1.msra.mxu0 %v736
        %853 = vmatprep.subr.mxu0 %v849
        %854 = vmatpush1.msra.mxu0 %v847
        %855 = vmatprep.subr.mxu0 0.0
        %856 = vmatpush1.msra.mxu0 0.0
        %857 = vmatprep.subr.mxu0 0.0
        %858 = vmatpush1.msra.mxu0 0.0
        %859 = vmatprep.subr.mxu0 0.0
        %860 = vmatpush1.msra.mxu0 0.0
        %861 = vmatprep.subr.mxu0 0.0
        %862 = vmatpush1.msra.mxu0 0.0
        %863 = vmatprep.subr.mxu0 0.0
        %864 = vmatpush1.msra.mxu0 0.0
        %865 = vmatprep.subr.mxu0 0.0
        %866 = vmatpush1.msra.mxu0 0.0
        %867 = vmatprep.subr.mxu0 0.0
        %868 = vmatpush1.msra.mxu0 0.0
        %869 = vmatprep.subr.mxu0 0.0
        %870 = vmatpush1.msra.mxu0 0.0
        %871 = vmatprep.subr.mxu0 0.0
        %872 = vmatpush1.msra.mxu0 0.0
        %873 = vmatprep.subr.mxu0 0.0
        %874 = vmatpush1.msra.mxu0 0.0
        %875 = vmatprep.subr.mxu0 0.0
        %876 = vmatpush1.msra.mxu0 0.0
        %877 = vmatprep.subr.mxu0 0.0
        %878 = vmatpush1.msra.mxu0 0.0
        %879 = vmatprep.subr.mxu0 0.0
        %880 = vmatpush1.msra.mxu0 0.0
        %881 = vmatprep.subr.mxu0 0.0
        %882 = vmatpush1.msra.mxu0 0.0
        %883 = vmatprep.subr.mxu0 0.0
        %884 = vmatpush1.msra.mxu0 0.0
        %885 = vmatprep.subr.mxu0 0.0
        %886 = vmatpush1.msra.mxu0 0.0
        %887 = vmatprep.subr.mxu0 0.0
        %888 = vmatpush1.msra.mxu0 0.0
        %889 = vmatprep.subr.mxu0 0.0
        %890 = vmatpush1.msra.mxu0 0.0
        %891 = vmatprep.subr.mxu0 0.0
        %892 = vmatpush1.msra.mxu0 0.0
        %893 = vmatprep.subr.mxu0 0.0
        %894 = vmatpush1.msra.mxu0 0.0
        %895 = vmatprep.subr.mxu0 0.0
        %896 = vmatpush1.msra.mxu0 0.0
        %897 = vmatprep.subr.mxu0 0.0
        %898 = vmatpush1.msra.mxu0 0.0
        %899 = vmatprep.subr.mxu0 0.0
        %900 = vmatpush1.msra.mxu0 0.0
        %901 = vmatprep.subr.mxu0 0.0
        %902 = vmatpush1.msra.mxu0 0.0
        %903 = vmatprep.subr.mxu0 0.0
        %904 = vmatpush1.msra.mxu0 0.0
        %905 = vmatprep.subr.mxu0 0.0
        %906 = vmatpush1.msra.mxu0 0.0
        %907 = vmatprep.subr.mxu0 0.0
        %908 = vmatpush1.msra.mxu0 0.0
        %909 = vmatprep.subr.mxu0 0.0
        %910 = vmatpush1.msra.mxu0 0.0
        %911 = vmatprep.subr.mxu0 0.0
        %912 = vmatpush1.msra.mxu0 0.0
        %913 = vmatprep.subr.mxu0 0.0
        %914 = vmatpush1.msra.mxu0 0.0
        %915 = vmatprep.mubr.f32.mxu0 0.0
        %916 = vmatmul.mubr.f32.gmra.mrb[0].mxu0 %v845
        %v917 = vpop.f32.mrb[0].mxu0
        %v918 = vadd.f32 %v840, %v917
        %v919 = vpop.f32.mrb[0].mxu0
        %v920 = vadd.f32 %v842, %v919
        %921 = vdwg.mxu0
        %922 = vrot.lane.b32.xlu0 %v736, 96
        %v923 = vpop.permute.xlu0 %922
        %924 = vrot.lane.b32.xlu0 %v737, 96
        %v925 = vpop.permute.xlu0 %924
        %926 = vrot.lane.b32.xlu0 %v740, 96
        %v927 = vpop.permute.xlu0 %926
        %928 = vrot.lane.b32.xlu0 %v738, 96
        %v929 = vpop.permute.xlu0 %928
        %930 = vrot.lane.b32.xlu0 %v739, 96
        %v931 = vpop.permute.xlu0 %930
        %932 = vrot.lane.b32.xlu0 %v741, 96
        %v933 = vpop.permute.xlu0 %932
        %v934 = vsel %vm527, %v923, %v925
        %v935 = vsel %vm527, %v925, %v927
        %v936 = vsel %vm527, %v929, %v931
        %v937 = vsel %vm527, %v931, %v933
        %v941 = vsel %vm357, %v211, 0
        %v943 = vsel %vm361, %v936, 0
        %v945 = vsel %vm361, %v937, 0
        %947 = vmatprep.subr.mxu0 %v935
        %948 = vmatpush1.msra.mxu0 %v934
        %949 = vmatprep.subr.mxu0 %v945
        %950 = vmatpush1.msra.mxu0 %v943
        %951 = vmatprep.subr.mxu0 0.0
        %952 = vmatpush1.msra.mxu0 0.0
        %953 = vmatprep.subr.mxu0 0.0
        %954 = vmatpush1.msra.mxu0 0.0
        %955 = vmatprep.subr.mxu0 0.0
        %956 = vmatpush1.msra.mxu0 0.0
        %957 = vmatprep.subr.mxu0 0.0
        %958 = vmatpush1.msra.mxu0 0.0
        %959 = vmatprep.subr.mxu0 0.0
        %960 = vmatpush1.msra.mxu0 0.0
        %961 = vmatprep.subr.mxu0 0.0
        %962 = vmatpush1.msra.mxu0 0.0
        %963 = vmatprep.subr.mxu0 0.0
        %964 = vmatpush1.msra.mxu0 0.0
        %965 = vmatprep.subr.mxu0 0.0
        %966 = vmatpush1.msra.mxu0 0.0
        %967 = vmatprep.subr.mxu0 0.0
        %968 = vmatpush1.msra.mxu0 0.0
        %969 = vmatprep.subr.mxu0 0.0
        %970 = vmatpush1.msra.mxu0 0.0
        %971 = vmatprep.subr.mxu0 0.0
        %972 = vmatpush1.msra.mxu0 0.0
        %973 = vmatprep.subr.mxu0 0.0
        %974 = vmatpush1.msra.mxu0 0.0
        %975 = vmatprep.subr.mxu0 0.0
        %976 = vmatpush1.msra.mxu0 0.0
        %977 = vmatprep.subr.mxu0 0.0
        %978 = vmatpush1.msra.mxu0 0.0
        %979 = vmatprep.subr.mxu0 0.0
        %980 = vmatpush1.msra.mxu0 0.0
        %981 = vmatprep.subr.mxu0 0.0
        %982 = vmatpush1.msra.mxu0 0.0
        %983 = vmatprep.subr.mxu0 0.0
        %984 = vmatpush1.msra.mxu0 0.0
        %985 = vmatprep.subr.mxu0 0.0
        %986 = vmatpush1.msra.mxu0 0.0
        %987 = vmatprep.subr.mxu0 0.0
        %988 = vmatpush1.msra.mxu0 0.0
        %989 = vmatprep.subr.mxu0 0.0
        %990 = vmatpush1.msra.mxu0 0.0
        %991 = vmatprep.subr.mxu0 0.0
        %992 = vmatpush1.msra.mxu0 0.0
        %993 = vmatprep.subr.mxu0 0.0
        %994 = vmatpush1.msra.mxu0 0.0
        %995 = vmatprep.subr.mxu0 0.0
        %996 = vmatpush1.msra.mxu0 0.0
        %997 = vmatprep.subr.mxu0 0.0
        %998 = vmatpush1.msra.mxu0 0.0
        %999 = vmatprep.subr.mxu0 0.0
        %1000 = vmatpush1.msra.mxu0 0.0
        %1001 = vmatprep.subr.mxu0 0.0
        %1002 = vmatpush1.msra.mxu0 0.0
        %1003 = vmatprep.subr.mxu0 0.0
        %1004 = vmatpush1.msra.mxu0 0.0
        %1005 = vmatprep.subr.mxu0 0.0
        %1006 = vmatpush1.msra.mxu0 0.0
        %1007 = vmatprep.subr.mxu0 0.0
        %1008 = vmatpush1.msra.mxu0 0.0
        %1009 = vmatprep.subr.mxu0 0.0
        %1010 = vmatpush1.msra.mxu0 0.0
        %1011 = vmatprep.mubr.f32.mxu0 0.0
        %1012 = vmatmul.mubr.f32.gmra.mrb[0].mxu0 %v941
        %v1013 = vpop.f32.mrb[0].mxu0
        %v1014 = vadd.f32 0.0, %v1013
        %v1015 = vpop.f32.mrb[0].mxu0
        %v1016 = vadd.f32 0.0, %v1015
        %1017 = vdwg.mxu0
        %v1018 = vadd.f32 %v918, %v1014
        %v1019 = vadd.f32 %v920, %v1016
        %v1020 = vsel %vm361, %v1018, 0.0
        %v1021 = vsel %vm361, %v1019, 0.0
        %v1022 = vadd.f32 %v1020, %v1021
        %1023 = vadd.xlane.f32.xlu0 %v1022
        %v1024 = vpop.xlane.xlu0 %1023
        %v1025 = vmul.f32 %v1018, %v1018
        %v1026 = vmul.f32 %v1019, %v1019
        %v1027 = vsel %vm361, %v1025, 0.0
        %v1028 = vsel %vm361, %v1026, 0.0
        %v1029 = vadd.f32 %v1027, %v1028
        %1030 = vadd.xlane.f32.xlu0 %v1029
        %v1031 = vpop.xlane.xlu0 %1030
        %v1032 = vmul.f32 %v1024, 0.00390625
        %v1033 = vmul.f32 %v1031, 0.00390625
        %v1034 = vmul.f32 %v1032, %v1032
        %v1035 = vsub.f32 %v1033, %v1034
        %v1036 = vsub.f32 %v1018, %v1032
        %v1037 = vsub.f32 %v1019, %v1032
        %v1038 = vadd.f32 %v1035, 1e-05
        %v1039 = vrsqrt.pop %v1038
        %v1040 = vmul.f32 %v1036, %v1039
        %v1041 = vmul.f32 %v1037, %v1039
        %v1042 = vcombine.high %v212, %v212
        %v1044 = vadd.f32 %v1040, %v212
        %v1045 = vadd.f32 %v1041, %v1042
        %v1048 = vcombine.low %v1044, %v1045
        %1050 = vst [vmem:[%s174] sm:$0xff] %v1048
        %s1051 = sand.u32 %s75, 1
        %s1052 = scalar_lea.sflag [#allocation5], %s1051
        %s1053 = sand.u32 %s75, 1
        %s1054 = smul.addr %s1053, 8
        %s1055 = scalar_lea.vmem [#allocation8], %s1054
        // Predicated region
        $region37: #{tpu_custom_call.1} parent=27 // pred_check
          %p1056 = pneg %p85
        $region38: #{tpu_custom_call.1} parent=27 // pred_check_branch
          %1058 = sbr.rel (%p1056) target = $region40
        $region39: #{tpu_custom_call.1} parent=27 // pred_region
          %s1060 = ssub.s32 128, 128
          %1061 = vsyncadd %s1052, %s1060
          %s1062 = smul.addr %s20, 2
          %s1063 = smul.addr %s1062, 64
          %s1064 = scalar_lea.hbm %s2, %s1063
          %s1066 = sshll.u32 %s1055, 4
          %s1067 = int_to_ptr.vmem [resolvable:$true] %s1066
          %1069 = dma.vmem_to_hbm [thread:$0]  %s1067, 128, %s1064, %s1052
        $region40: #{tpu_custom_call.1} parent=27 // pred_fallthru
          _
      $region28: #{tpu_custom_call.1} parent=5 // pred_fallthru
        _
      %p1070 = scmp.le.s32.totalorder 2, %s15
      // Predicated region
      $region41: #{tpu_custom_call.1} parent=5 // pred_check
        %p1071 = pneg %p1070
      $region42: #{tpu_custom_call.1} parent=5 // pred_check_branch
        %1073 = sbr.rel (%p1071) target = $region44
      $region43: #{tpu_custom_call.1} parent=5 // pred_region
        %s1074 = ssub.s32 %s15, 2
        // Predicated region
        $region45: #{tpu_custom_call.1} parent=43 // pred_check
          %p1075 = pneg %p91
        $region46: #{tpu_custom_call.1} parent=43 // pred_check_branch
          %1077 = sbr.rel (%p1075) target = $region48
        $region47: #{tpu_custom_call.1} parent=43 // pred_region
          %s1078 = sand.u32 %s76, 1
          %s1079 = scalar_lea.sflag [#allocation5], %s1078
          %s1080 = sand.u32 %s76, 1
          %s1081 = smul.addr %s1080, 8
          %s1082 = scalar_lea.vmem [#allocation8], %s1081
          %1083 = dma.done %s1079, 128
        $region48: #{tpu_custom_call.1} parent=43 // pred_fallthru
          _
      $region44: #{tpu_custom_call.1} parent=5 // pred_fallthru
        _
    $region6: #{tpu_custom_call.1} parent=1 // loop_footer
      %s19 = sadd.s32 1, %s15
    $region7: #{tpu_custom_call.1} parent=1 // loop_footer_branch
      %14 = sbr.rel target = $region3
    $region8: #{tpu_custom_call.1} parent=1 // loop_exit
      _
    %1084 = vsyncpa [#allocation4], 1
    %s1085 = scalar_lea.sflag [#allocation4], 1
    %1086 = vsyncpa %s1085, 1
    %1087 = vsyncpa [#allocation7], 1
    %1088 = vsyncpa [#allocation5], 1
    %s1089 = scalar_lea.sflag [#allocation5], 1
    %1090 = vsyncpa %s1089, 1

</llo_original>
